<compile_context>
chip_gen: v6e
topology: v6e:2x2x1
jax: 0.10.0
libtpu: 0.0.40
codegen_flags: <defaults>
</compile_context>

<pallas_src>
import functools

import jax
import jax.numpy as jnp
from jax.experimental import pallas as pl
from jax.experimental.pallas import tpu as pltpu


# ----------------------------------------------------------------------------
# Generation-dependent sizing (queried once at import).
# ----------------------------------------------------------------------------
def _detect_vmem_capacity_bytes():
    try:
        cap = getattr(pltpu.get_tpu_info(), "vmem_capacity_bytes", None)
        if cap:
            return int(cap)
    except Exception:
        pass
    return 64 * 1024 * 1024  # conservative fallback: v7x per-TC VMEM


_VMEM_CAPACITY_BYTES = _detect_vmem_capacity_bytes()

# Block size: big enough to amortize the ~0.35us per-grid-step overhead, small
# enough that double-buffered in+out (~4x block) fits the generation's VMEM.
if _VMEM_CAPACITY_BYTES >= 128 * 1024 * 1024:        # v5e / v6e (128 MiB VMEM)
    _TARGET_BLOCK_BYTES = 16 * 1024 * 1024
else:                                                # v7x (64 MiB) or unknown
    _TARGET_BLOCK_BYTES = 8 * 1024 * 1024

_VMEM_LIMIT_BYTES = min(
    4 * _TARGET_BLOCK_BYTES + 2 * 1024 * 1024,       # actual need + headroom
    _VMEM_CAPACITY_BYTES - 8 * 1024 * 1024,          # never exceed physical
)

_SMALL_FALLBACK_BYTES = 256 * 1024  # below this, plain jnp.clip (fuses in XLA)


# ----------------------------------------------------------------------------
# Kernel
# ----------------------------------------------------------------------------
def _clamp_kernel(bounds_ref, x_ref, o_ref):
    # bounds_ref is a (2,) 32-bit array in SMEM: two scalar loads per grid
    # step, cast to the tile dtype (so bf16 / int tiles don't promote to f32).
    x = x_ref[...]
    lo = bounds_ref[0].astype(x.dtype)
    hi = bounds_ref[1].astype(x.dtype)
    # clamp(min=lo, max=hi) == min(max(x, lo), hi)  -- 2 VPU ops, hidden by DMA.
    o_ref[...] = jnp.minimum(jnp.maximum(x, lo), hi)


def _sublane_min(dtype):
    # minimum second-to-last tile dim: 8 (f32/i32), 16 (bf16), 32 (i8/fp8)
    return max(8, 32 // jnp.dtype(dtype).itemsize)


def _pallas_clamp_2d(x2d, bounds):
    """Clamp a lane-dense (rows, lane_width) slab; lane_width % 128 == 0."""
    rows, lane_width = x2d.shape
    dtype = x2d.dtype
    itemsize = jnp.dtype(dtype).itemsize
    sub = _sublane_min(dtype)

    target_rows = max(sub, _TARGET_BLOCK_BYTES // (lane_width * itemsize))
    target_rows = max(sub, (target_rows // sub) * sub)

    if rows <= target_rows:
        block_rows = rows            # full array dim -> always a legal tile
    else:
        block_rows = target_rows     # multiple of the sublane minimum

    # Keep >= 2 grid steps when possible so dimension_semantics=("parallel",)
    # can shard the loop across v7x's two TensorCores (negligible cost on
    # single-TC v5e/v6e).
    if block_rows >= rows and rows >= 2 * sub:
        half = -(-rows // 2)
        block_rows = ((half + sub - 1) // sub) * sub

    grid = (pl.cdiv(rows, block_rows),)

    # NOTE: the last grid block may be ragged (rows % block_rows != 0); Pallas
    # masks the out-of-range rows of that block automatically -- do not switch
    # to manual DMA / pltpu.store here without adding explicit row masking.
    return pl.pallas_call(
        _clamp_kernel,
        out_shape=jax.ShapeDtypeStruct((rows, lane_width), dtype),
        grid=grid,
        in_specs=[
            pl.BlockSpec(memory_space=pltpu.MemorySpace.SMEM),       # (2,) bounds
            pl.BlockSpec((block_rows, lane_width), lambda i: (i, 0)),
        ],
        out_specs=pl.BlockSpec((block_rows, lane_width), lambda i: (i, 0)),
        compiler_params=pltpu.CompilerParams(
            dimension_semantics=("parallel",),
            vmem_limit_bytes=_VMEM_LIMIT_BYTES,
        ),
    )(bounds, x2d)


# ----------------------------------------------------------------------------
# Public wrapper (jitted -> reshapes are free, one compilation per shape/dtype)
# ----------------------------------------------------------------------------
@functools.partial(jax.jit, static_argnames=("small_fallback_bytes",))
def chris_clamp(x, low, high, *, small_fallback_bytes=_SMALL_FALLBACK_BYTES):
    """Pallas TPU implementation of torch.Tensor.clamp(min=low, max=high)."""
    dtype = x.dtype
    total = x.size
    if total == 0:
        return x

    # Bounds in the element dtype (preserves integer-clamp semantics, avoids
    # promotion inside the kernel / fallback path).
    lo_x = jnp.asarray(low, dtype)
    hi_x = jnp.asarray(high, dtype)

    itemsize = jnp.dtype(dtype).itemsize
    if total * itemsize < small_fallback_bytes:
        # Tiny tensors: pallas_call dispatch + pipeline ramp dominate, and
        # jnp.clip can fuse into neighboring XLA ops.
        return jnp.clip(x, lo_x, hi_x)

    # 32-bit SMEM-friendly bounds; cast to the tile dtype inside the kernel.
    bounds_dtype = jnp.float32 if jnp.issubdtype(dtype, jnp.floating) else jnp.int32
    bounds = jnp.stack(
        [jnp.asarray(low, bounds_dtype), jnp.asarray(high, bounds_dtype)]
    )

    x_flat = x.reshape(-1)  # contiguous row-major -> free under jit

    # Widest lane-dense width (multiple of 128) dividing the flat size ->
    # free reshape, unmasked full-width stores, no padding.
    lane_width = None
    for w in (4096, 2048, 1024, 512, 256, 128):
        if total % w == 0:
            lane_width = w
            break

    if lane_width is not None:
        x2d = x_flat.reshape(total // lane_width, lane_width)
        out_flat = _pallas_clamp_2d(x2d, bounds).reshape(-1)
    else:
        # Non-128-divisible size: run the kernel on the 128-aligned prefix and
        # clamp the (<128-element) tail with fused XLA ops -- no full-tensor
        # pad or output slice copies.
        rem = total % 128
        aligned = total - rem
        if aligned == 0:
            return jnp.clip(x, lo_x, hi_x)
        head2d = x_flat[:aligned].reshape(aligned // 128, 128)
        head_out = _pallas_clamp_2d(head2d, bounds).reshape(-1)
        tail_out = jnp.clip(x_flat[aligned:], lo_x, hi_x)
        out_flat = jnp.concatenate([head_out, tail_out])

    return out_flat.reshape(x.shape)


# ----------------------------------------------------------------------------
# Demo / self-test
# ----------------------------------------------------------------------------
if __name__ == "__main__":
    key = jax.random.PRNGKey(0)
    low, high = -0.5, 0.5

    # Small NCHW input consistent with the module; small_fallback_bytes=0
    # forces the Pallas kernel path even at this demo size.
    x = jax.random.normal(key, (2, 4, 16, 16), dtype=jnp.float32)
    out = jax.block_until_ready(chris_clamp(x, low, high, small_fallback_bytes=0))
    ref = jnp.clip(x, low, high)
    assert out.shape == x.shape and out.dtype == x.dtype
    assert jnp.allclose(out, ref), "mismatch vs reference clamp (main shape)"

    # Non-128-divisible flat size -> 128-aligned-prefix kernel + fused tail clip.
    x2 = jax.random.normal(jax.random.PRNGKey(1), (2, 3, 5, 7), dtype=jnp.float32)
    out2 = jax.block_until_ready(chris_clamp(x2, low, high, small_fallback_bytes=0))
    ref2 = jnp.clip(x2, low, high)
    assert out2.shape == x2.shape and out2.dtype == x2.dtype
    assert jnp.allclose(out2, ref2), "mismatch vs reference clamp (prefix/tail path)"

    # Default small-tensor fallback path (fused jnp.clip).
    out3 = jax.block_until_ready(chris_clamp(x, low, high))
    assert jnp.allclose(out3, ref), "mismatch vs reference clamp (fallback path)"

    # Different bounds reuse the same compilation (bounds are traced operands).
    out4 = jax.block_until_ready(chris_clamp(x, -0.25, 0.75, small_fallback_bytes=0))
    assert jnp.allclose(out4, jnp.clip(x, -0.25, 0.75)), "mismatch (new bounds)"

    print("KERNEL_OK")
</pallas_src>

<mosaic_0001>
module attributes {stable_mosaic.version = 11 : i64} {
  func.func @_clamp_kernel(%arg0: i32, %arg1: memref<2xf32, #tpu.memory_space<smem>>, %arg2: memref<1x2048xf32, #tpu.memory_space<vmem>>, %arg3: memref<1x2048xf32, #tpu.memory_space<vmem>>) attributes {dimension_semantics = [#tpu.dimension_semantics<parallel>], iteration_bounds = array<i64: 1>, scalar_prefetch = 0 : i64, scratch_operands = 0 : i64, tpu.core_type = #tpu.core_type<tc>, window_params = [{transform_indices = @transform_0, window_bounds = array<i64: 2>}, {transform_indices = @transform_1, window_bounds = array<i64: 1, 2048>}, {transform_indices = @transform_2, window_bounds = array<i64: 1, 2048>}]} {
    %c0 = arith.constant 0 : index
    %c0_0 = arith.constant 0 : index
    %0 = vector.load %arg2[%c0, %c0_0] : memref<1x2048xf32, #tpu.memory_space<vmem>>, vector<1x2048xf32>
    %c0_1 = arith.constant 0 : index
    %1 = memref.load %arg1[%c0_1] : memref<2xf32, #tpu.memory_space<smem>>
    %c1 = arith.constant 1 : index
    %2 = memref.load %arg1[%c1] : memref<2xf32, #tpu.memory_space<smem>>
    %3 = vector.broadcast %1 : f32 to vector<1x2048xf32>
    %4 = arith.maximumf %0, %3 : vector<1x2048xf32>
    %5 = vector.broadcast %2 : f32 to vector<1x2048xf32>
    %6 = arith.minimumf %4, %5 : vector<1x2048xf32>
    %c0_2 = arith.constant 0 : index
    %c0_3 = arith.constant 0 : index
    %7 = vector.load %arg3[%c0_2, %c0_3] : memref<1x2048xf32, #tpu.memory_space<vmem>>, vector<1x2048xf32>
    tpu.vector_store %arg3[%c0_2, %c0_3], %6 {strides = array<i32>} : memref<1x2048xf32, #tpu.memory_space<vmem>>, vector<1x2048xf32>,
    return
  }
  func.func @transform_0(%arg0: i32) -> i32 {
    %c0_i32 = arith.constant 0 : i32
    %c0_i32_0 = arith.constant 0 : i32
    return %c0_i32 : i32
  }
  func.func @transform_1(%arg0: i32) -> (i32, i32) {
    %c0_i32 = arith.constant 0 : i32
    %c0_i32_0 = arith.constant 0 : i32
    return %arg0, %c0_i32 : i32, i32
  }
  func.func @transform_2(%arg0: i32) -> (i32, i32) {
    %c0_i32 = arith.constant 0 : i32
    %c0_i32_0 = arith.constant 0 : i32
    return %arg0, %c0_i32 : i32, i32
  }
}

</mosaic_0001>

<llo_original>
// kernel: chris_clamp.1
$region0: #{chris_clamp.1}
  #allocation0 [shape = 'u32[]', space=smem, size = 0x4, offset = 0x4, fixed_abs, tag = 'smem constant byte address 0x4 - core index']
  #allocation1 [shape = 'u32[144,128]{1,0:T(1,128)}', space=vmem, size = 0x12000, scoped, tag = 'internal scratch']
  %s0 = inlined_call_operand.vmem [shape: f32[2], index: 0, kind: input, shape index: {}]
  %s1 = inlined_call_operand.vmem [shape: f32[1,2048], index: 1, kind: input, shape index: {}]
  %s2 = inlined_call_operand.vmem [shape: f32[1,2048], index: 2, kind: output, shape index: {}]
  %s3 = sld [smem:[#allocation0]]
  $region22: #{chris_clamp.1} parent=0
    _
  %s5 = ssub.s32 1, %s3
  %s6 = scalar_select 0, %s5, %s3
  $region1: #{chris_clamp.1} parent=0
    #allocation2 [shape = 'u8[512]{0}', space=smem, size = 0x200, scoped, tag = 'input window, operand 0, single buffered']
    #allocation3 [shape = 's32[1]{0}', space=sflag, size = 0x4, scoped, tag = 'scoped memory for chris_clamp.1']
    %7 = vsyncpa [#allocation3], 0
    // Predicated region
    $region2: #{chris_clamp.1} parent=1 // pred_check
      _
    $region3: #{chris_clamp.1} parent=1 // pred_check_branch
      %9 = sbr.rel (0) target = $region5
    $region4: #{chris_clamp.1} parent=1 // pred_region
      %s11 = ssub.s32 16, 16
      %12 = vsyncadd [#allocation3], %s11
      %s14 = sshll.u32 %s0, 4
      %s15 = int_to_ptr.vmem [resolvable:$true] %s14
      %17 = dma.vmem_to_smem %s15, 16, [#allocation2], [#allocation3]
    $region5: #{chris_clamp.1} parent=1 // pred_fallthru
      _
    // Predicated region
    $region6: #{chris_clamp.1} parent=1 // pred_check
      _
    $region7: #{chris_clamp.1} parent=1 // pred_check_branch
      %19 = sbr.rel (0) target = $region9
    $region8: #{chris_clamp.1} parent=1 // pred_region
      _
    $region9: #{chris_clamp.1} parent=1 // pred_fallthru
      _
    // Predicated region
    $region10: #{chris_clamp.1} parent=1 // pred_check
      _
    $region11: #{chris_clamp.1} parent=1 // pred_check_branch
      %21 = sbr.rel (0) target = $region13
    $region12: #{chris_clamp.1} parent=1 // pred_region
      %22 = dma.done [#allocation3], 16
    $region13: #{chris_clamp.1} parent=1 // pred_fallthru
      _
    %23 = sfence
    %v24 = vld [vmem:[%s1] sm:$0xff]
    %v25 = vld [vmem:[%s1 + $0x8] sm:$0xff]
    %s26 = sld [smem:[#allocation2]]
    %s27 = sld [smem:[#allocation2 + $0x1]]
    %v28 = vstv %s26
    %v29 = vmax.f32 %v24, %v28
    %v30 = vmax.f32 %v25, %v28
    %v31 = vstv %s27
    %v32 = vmin.f32 %v29, %v31
    %v33 = vmin.f32 %v30, %v31
    %34 = vst [vmem:[%s2] sm:$0xff] %v32
    %35 = vst [vmem:[%s2 + $0x8] sm:$0xff] %v33
    // Predicated region
    $region14: #{chris_clamp.1} parent=1 // pred_check
      _
    $region15: #{chris_clamp.1} parent=1 // pred_check_branch
      %37 = sbr.rel (0) target = $region17
    $region16: #{chris_clamp.1} parent=1 // pred_region
      _
    $region17: #{chris_clamp.1} parent=1 // pred_fallthru
      _
    // Predicated region
    $region18: #{chris_clamp.1} parent=1 // pred_check
      _
    $region19: #{chris_clamp.1} parent=1 // pred_check_branch
      %39 = sbr.rel (0) target = $region21
    $region20: #{chris_clamp.1} parent=1 // pred_region
      _
    $region21: #{chris_clamp.1} parent=1 // pred_fallthru
      _
    %40 = vsyncpa [#allocation3], 1

</llo_original>
